<compile_context>
chip_gen: v6e
topology: v6e:2x2x1
jax: 0.10.0
libtpu: 0.0.40
codegen_flags: <defaults>
</compile_context>

<pallas_src>
import jax
import jax.numpy as jnp
from jax.experimental import pallas as pl
from jax.experimental.pallas import tpu as pltpu


def _fused_add_kernel(stk_ref, o_ref):
    # stk_ref: (4, N) f32 VMEM tile holding [x, module_bias, s0, s1] row-wise.
    # o_ref:   (1, N) f32 VMEM tile (lane-dense output slab).
    v = stk_ref[...]                               # single vector load
    o_ref[...] = (v[0:1, :] + v[1:2, :]) + (v[2:3, :] + v[3:4, :])


def _forward_impl(x, module_bias, s0, s1):
    n = x.size                                     # 20 for (10, 2)
    # One stacked, lane-dense operand: (4, n). The stack/reshape fuse into the
    # surrounding jit; the Pallas call then needs exactly one input DMA.
    stacked = jnp.stack(
        [x.reshape(-1), module_bias.reshape(-1), s0.reshape(-1), s1.reshape(-1)],
        axis=0,
    )
    out = pl.pallas_call(
        _fused_add_kernel,
        out_shape=jax.ShapeDtypeStruct((1, n), x.dtype),
        in_specs=[pl.BlockSpec(memory_space=pltpu.VMEM)],   # full-array block
        out_specs=pl.BlockSpec(memory_space=pltpu.VMEM),
    )(stacked)
    return out.reshape(x.shape)


mock_module_forward = jax.jit(_forward_impl)


def make_module_params(key, shape=(10, 2)):
    """Init-time setup of MockModule: self.s.x, self.s.y (and their folded sum)."""
    k_mx, k_my = jax.random.split(key)
    module_s_x = jax.random.normal(k_mx, shape, dtype=jnp.float32)
    module_s_y = jax.random.normal(k_my, shape, dtype=jnp.float32)
    # Constant fold: the module parameters never change between forward calls.
    module_bias = module_s_x + module_s_y
    return module_s_x, module_s_y, module_bias


if __name__ == "__main__":
    key = jax.random.PRNGKey(0)
    k_params, k_x, k_s0, k_s1 = jax.random.split(key, 4)

    shape = (10, 2)  # matches torch.randn(10, 2) in MockState / MockModule
    module_s_x, module_s_y, module_bias = make_module_params(k_params, shape)

    x = jax.random.normal(k_x, shape, dtype=jnp.float32)

    # The state argument s passed to forward: s[0], s[1].
    # (s.z = 1.28 is a scalar field of the state tuple but is NOT used in forward.)
    s0 = jax.random.normal(k_s0, shape, dtype=jnp.float32)
    s1 = jax.random.normal(k_s1, shape, dtype=jnp.float32)

    out = mock_module_forward(x, module_bias, s0, s1)
    out = jax.block_until_ready(out)

    ref = x + module_s_x + module_s_y + s0 + s1
    assert out.shape == shape and out.dtype == jnp.float32
    assert jnp.allclose(out, ref, atol=1e-6, rtol=1e-6)

    print("KERNEL_OK")
</pallas_src>

<mosaic_0001>
module attributes {stable_mosaic.version = 11 : i64} {
  func.func @_fused_add_kernel(%arg0: memref<4x20xf32, #tpu.memory_space<vmem>>, %arg1: memref<1x20xf32, #tpu.memory_space<vmem>>) attributes {dimension_semantics = [], scalar_prefetch = 0 : i64, scratch_operands = 0 : i64, tpu.core_type = #tpu.core_type<tc>} {
    %c0 = arith.constant 0 : index
    %c0_0 = arith.constant 0 : index
    %0 = vector.load %arg0[%c0, %c0_0] : memref<4x20xf32, #tpu.memory_space<vmem>>, vector<4x20xf32>
    %1 = vector.extract_strided_slice %0 {offsets = [0, 0], sizes = [1, 20], strides = [1, 1]} : vector<4x20xf32> to vector<1x20xf32>
    %2 = vector.extract_strided_slice %0 {offsets = [1, 0], sizes = [1, 20], strides = [1, 1]} : vector<4x20xf32> to vector<1x20xf32>
    %3 = arith.addf %1, %2 : vector<1x20xf32>
    %4 = vector.extract_strided_slice %0 {offsets = [2, 0], sizes = [1, 20], strides = [1, 1]} : vector<4x20xf32> to vector<1x20xf32>
    %5 = vector.extract_strided_slice %0 {offsets = [3, 0], sizes = [1, 20], strides = [1, 1]} : vector<4x20xf32> to vector<1x20xf32>
    %6 = arith.addf %4, %5 : vector<1x20xf32>
    %7 = arith.addf %3, %6 : vector<1x20xf32>
    %c0_1 = arith.constant 0 : index
    %c0_2 = arith.constant 0 : index
    %8 = vector.load %arg1[%c0_1, %c0_2] : memref<1x20xf32, #tpu.memory_space<vmem>>, vector<1x20xf32>
    tpu.vector_store %arg1[%c0_1, %c0_2], %7 {strides = array<i32>} : memref<1x20xf32, #tpu.memory_space<vmem>>, vector<1x20xf32>,
    return
  }
}

</mosaic_0001>

<llo_original>
// kernel: _forward_impl.1
$region0: #{_forward_impl.1}
  #allocation0 [shape = 'u32[]', space=smem, size = 0x4, offset = 0x4, fixed_abs, tag = 'smem constant byte address 0x4 - core index']
  #allocation1 [shape = 'u32[144,128]{1,0:T(1,128)}', space=vmem, size = 0x12000, scoped, tag = 'internal scratch']
  %s0 = inlined_call_operand.vmem [shape: f32[4,20], index: 0, kind: input, shape index: {}]
  %s1 = inlined_call_operand.vmem [shape: f32[1,20], index: 1, kind: output, shape index: {}]
  %s2 = sld [smem:[#allocation0]]
  $region14: #{_forward_impl.1} parent=0
    _
  %s4 = ssub.s32 1, %s2
  %s5 = scalar_select 0, %s4, %s2
  // Predicated region
  $region2: #{_forward_impl.1} parent=0 // pred_check
    _
  $region3: #{_forward_impl.1} parent=0 // pred_check_branch
    %7 = sbr.rel (0) target = $region5
  $region4: #{_forward_impl.1} parent=0 // pred_region
    _
  $region5: #{_forward_impl.1} parent=0 // pred_fallthru
    _
  %v8 = vld [vmem:[%s0] sm:$0xf]
  %v10 = vrot.slane %v8, 1
  %v12 = vadd.f32 %v8, %v10
  %v14 = vrot.slane %v12, 2
  %v16 = vadd.f32 %v12, %v14
  %vm17 = vcmask 155648
  %18 = vst.msk [vmem:[%s1] sm:$0x1] %vm17, %v16
  // Predicated region
  $region6: #{_forward_impl.1} parent=0 // pred_check
    _
  $region7: #{_forward_impl.1} parent=0 // pred_check_branch
    %20 = sbr.rel (0) target = $region9
  $region8: #{_forward_impl.1} parent=0 // pred_region
    _
  $region9: #{_forward_impl.1} parent=0 // pred_fallthru
    _
  // Predicated region
  $region10: #{_forward_impl.1} parent=0 // pred_check
    _
  $region11: #{_forward_impl.1} parent=0 // pred_check_branch
    %22 = sbr.rel (0) target = $region13
  $region12: #{_forward_impl.1} parent=0 // pred_region
    _
  $region13: #{_forward_impl.1} parent=0 // pred_fallthru
    _

</llo_original>
